<compile_context>
chip_gen: v7x
topology: tpu7x:2x2x1
jax: 0.10.0
libtpu: 0.0.40
codegen_flags: <defaults>
</compile_context>

<pallas_src>
import functools

import jax
import jax.numpy as jnp
from jax.experimental import pallas as pl
from jax.experimental.pallas import tpu as pltpu


def _round_up(a: int, b: int) -> int:
    return ((a + b - 1) // b) * b


def mlp_ode_kernel(x_ref, w1_ref, b1_ref, w2_ref, b2_ref, o_ref):
    # fc1: bf16 x bf16 on the MXU with f32 accumulation; bias + ReLU in f32.
    h = jnp.dot(x_ref[...], w1_ref[...], preferred_element_type=jnp.float32)
    h = jnp.maximum(h + b1_ref[...], 0.0)
    # fc2: cast the activation operand back to the weight dtype (bf16) so the
    # second matmul also runs bf16 MXU passes; accumulate + bias in f32.
    out = jnp.dot(h.astype(w2_ref.dtype), w2_ref[...],
                  preferred_element_type=jnp.float32) + b2_ref[...]
    o_ref[...] = out.astype(o_ref.dtype)


def _default_target_lanes() -> int:
    """256-lane packing on v6e/v7x (256-deep MXU), 128 elsewhere."""
    try:
        kind = jax.devices()[0].device_kind.lower()
    except Exception:
        return 128
    if "v6" in kind or "v7" in kind:
        return 256
    return 128


def _choose_pack(c_in: int, target_lanes: int) -> int:
    for lanes in (target_lanes, 128):
        if c_in <= lanes and lanes % c_in == 0:
            return lanes // c_in
    # Slow path: last dim stays < 128 (masked lanes, K-starved MXU).
    return 1


def _choose_tile(rows: int, tm_max: int = 1024):
    """Balanced row tile; >=2 grid steps once there is enough work (v7x megacore)."""
    n_tiles = max(1, pl.cdiv(rows, tm_max))
    if rows >= 512 and n_tiles < 2:
        n_tiles = 2
    tm = _round_up(pl.cdiv(rows, n_tiles), 8)
    return tm, pl.cdiv(rows, tm)


def pack_mlp_ode_params(w1, b1, w2, b2, *, dtype=jnp.bfloat16, target_lanes=None):
    """Pre-pack PyTorch-layout nn.Linear params for the Pallas kernel.

    w1: [H, Cin], b1: [H], w2: [Cout, H], b2: [Cout]  (nn.Linear layout).
    Call ONCE, outside the ODE solver loop, and reuse for every RHS eval.
    Weights are stored in `dtype` (bf16 by default -> bf16 MXU passes);
    biases stay f32 for the f32 epilogue.
    """
    hidden, c_in = w1.shape
    c_out = w2.shape[0]
    if target_lanes is None:
        target_lanes = _default_target_lanes()
    pack = _choose_pack(c_in, target_lanes)

    eye = jnp.eye(pack, dtype=jnp.float32)
    w1p = jnp.kron(eye, jnp.asarray(w1, jnp.float32).T).astype(dtype)  # [pack*Cin, pack*H]
    w2p = jnp.kron(eye, jnp.asarray(w2, jnp.float32).T).astype(dtype)  # [pack*H, pack*Cout]
    b1p = jnp.tile(jnp.asarray(b1, jnp.float32), (pack,)).reshape(1, pack * hidden)
    b2p = jnp.tile(jnp.asarray(b2, jnp.float32), (pack,)).reshape(1, pack * c_out)

    return dict(w1p=w1p, b1p=b1p, w2p=w2p, b2p=b2p,
                c_in=c_in, hidden=hidden, c_out=c_out, pack=pack)


def dynamics_mlp_ode(t, x, params, *, tm_max=1024, out_dtype=jnp.float32):
    """Pallas DynamicsMLP_ODE.forward(t, x).  `t` is accepted and ignored."""
    del t  # unused, exactly as in the reference module
    c_in, hidden, c_out, pack = (params["c_in"], params["hidden"],
                                 params["c_out"], params["pack"])
    w1p, b1p, w2p, b2p = (params["w1p"], params["b1p"],
                          params["w2p"], params["b2p"])
    N = x.shape[0]
    kp = pack * c_in        # packed input width
    hp = pack * hidden      # packed hidden width
    cp = pack * c_out       # packed output width

    # Stream activations in the weight dtype (bf16); accumulation stays f32.
    x = jnp.asarray(x, w1p.dtype)

    # Only pad to a multiple of `pack` (needed for the lane-pack reshape);
    # the ragged last row-tile is handled by Pallas via the cdiv grid.
    n_packed = _round_up(N, pack)
    if n_packed != N:
        x = jnp.pad(x, ((0, n_packed - N), (0, 0)))
    rows = n_packed // pack
    xp = x.reshape(rows, kp)                        # free row-major view

    tm, n_tiles = _choose_tile(rows, tm_max)
    grid = (n_tiles,)

    out_p = pl.pallas_call(
        mlp_ode_kernel,
        out_shape=jax.ShapeDtypeStruct((rows, cp), out_dtype),
        grid_spec=pltpu.PrefetchScalarGridSpec(
            num_scalar_prefetch=0,
            grid=grid,
            in_specs=[
                pl.BlockSpec((tm, kp), lambda i: (i, 0)),   # packed x tile (bf16)
                pl.BlockSpec((kp, hp), lambda i: (0, 0)),   # blockdiag(W1^T), resident
                pl.BlockSpec((1, hp), lambda i: (0, 0)),    # tiled b1 (f32)
                pl.BlockSpec((hp, cp), lambda i: (0, 0)),   # blockdiag(W2^T), resident
                pl.BlockSpec((1, cp), lambda i: (0, 0)),    # tiled b2 (f32)
            ],
            out_specs=pl.BlockSpec((tm, cp), lambda i: (i, 0)),
        ),
        compiler_params=pltpu.CompilerParams(
            dimension_semantics=("parallel",),
            vmem_limit_bytes=32 * 1024 * 1024,
        ),
    )(xp, w1p, b1p, w2p, b2p)

    out = out_p.reshape(rows * pack, c_out)
    return out[:N] if rows * pack != N else out


if __name__ == "__main__":
    # Small shapes consistent with the module:
    #   N points, in_channels=32, hidden_channels=64, out_channels=32
    N, c_in, hidden, c_out = 128, 32, 64, 32

    key = jax.random.PRNGKey(0)
    kx, kw1, kb1, kw2, kb2 = jax.random.split(key, 5)

    x = jax.random.normal(kx, (N, c_in), dtype=jnp.float32)
    t = jnp.float32(0.5)  # ODE time argument: unused by the forward pass

    # Deterministic parameter init (nn.Linear weight layout: [out, in]).
    w1 = 0.1 * jax.random.normal(kw1, (hidden, c_in), dtype=jnp.float32)
    b1 = 0.1 * jax.random.normal(kb1, (hidden,), dtype=jnp.float32)
    w2 = 0.1 * jax.random.normal(kw2, (c_out, hidden), dtype=jnp.float32)
    b2 = 0.1 * jax.random.normal(kb2, (c_out,), dtype=jnp.float32)

    # Pack/transpose weights once (hoisted out of the per-call path).
    params = pack_mlp_ode_params(w1, b1, w2, b2)
    fwd = jax.jit(functools.partial(dynamics_mlp_ode, params=params))

    out = fwd(t, x)
    jax.block_until_ready(out)

    # Pure-JAX f32 reference of the same semantics.
    ref = jnp.maximum(x @ w1.T + b1, 0.0) @ w2.T + b2
    assert out.shape == (N, c_out)
    # bf16 streaming/weights with f32 accumulation (K per block is only 32/64):
    # loosened tolerance per review.
    assert jnp.allclose(out, ref, atol=3e-2, rtol=3e-2), "mismatch vs reference"

    print("KERNEL_OK")
</pallas_src>

<mosaic_0001>
module attributes {stable_mosaic.version = 11 : i64} {
  func.func @mlp_ode_kernel(%arg0: i32, %arg1: memref<32x128xbf16, #tpu.memory_space<vmem>>, %arg2: memref<128x256xbf16, #tpu.memory_space<vmem>>, %arg3: memref<1x256xf32, #tpu.memory_space<vmem>>, %arg4: memref<256x128xbf16, #tpu.memory_space<vmem>>, %arg5: memref<1x128xf32, #tpu.memory_space<vmem>>, %arg6: memref<32x128xf32, #tpu.memory_space<vmem>>) attributes {dimension_semantics = [#tpu.dimension_semantics<parallel>], iteration_bounds = array<i64: 1>, scalar_prefetch = 0 : i64, scratch_operands = 0 : i64, tpu.core_type = #tpu.core_type<tc>, window_params = [{transform_indices = @transform_0, window_bounds = array<i64: 32, 128>}, {pipeline_mode = #tpu.pipeline_mode<synchronous>, transform_indices = @transform_1, window_bounds = array<i64: 128, 256>}, {pipeline_mode = #tpu.pipeline_mode<synchronous>, transform_indices = @transform_2, window_bounds = array<i64: 1, 256>}, {pipeline_mode = #tpu.pipeline_mode<synchronous>, transform_indices = @transform_3, window_bounds = array<i64: 256, 128>}, {pipeline_mode = #tpu.pipeline_mode<synchronous>, transform_indices = @transform_4, window_bounds = array<i64: 1, 128>}, {transform_indices = @transform_5, window_bounds = array<i64: 32, 128>}]} {
    %c0 = arith.constant 0 : index
    %c0_0 = arith.constant 0 : index
    %0 = vector.load %arg1[%c0, %c0_0] : memref<32x128xbf16, #tpu.memory_space<vmem>>, vector<32x128xbf16>
    %c0_1 = arith.constant 0 : index
    %c0_2 = arith.constant 0 : index
    %1 = vector.load %arg2[%c0_1, %c0_2] : memref<128x256xbf16, #tpu.memory_space<vmem>>, vector<128x256xbf16>
    %cst = arith.constant dense<0.000000e+00> : vector<32x256xf32>
    %2 = tpu.matmul %0, %1, %cst {dimension_numbers = #tpu.dot_dimension_numbers<[1], [0], [0], [1], [0, 0, 1, 1], [], []>} : vector<32x128xbf16>, vector<128x256xbf16>, vector<32x256xf32> -> vector<32x256xf32>
    %c0_3 = arith.constant 0 : index
    %c0_4 = arith.constant 0 : index
    %3 = vector.load %arg3[%c0_3, %c0_4] : memref<1x256xf32, #tpu.memory_space<vmem>>, vector<1x256xf32>
    %4 = vector.broadcast %3 : vector<1x256xf32> to vector<32x256xf32>
    %5 = arith.addf %2, %4 : vector<32x256xf32>
    %cst_5 = arith.constant 0.000000e+00 : f32
    %6 = vector.broadcast %cst_5 : f32 to vector<32x256xf32>
    %7 = arith.maximumf %5, %6 : vector<32x256xf32>
    %8 = arith.truncf %7 : vector<32x256xf32> to vector<32x256xbf16>
    %c0_6 = arith.constant 0 : index
    %c0_7 = arith.constant 0 : index
    %9 = vector.load %arg4[%c0_6, %c0_7] : memref<256x128xbf16, #tpu.memory_space<vmem>>, vector<256x128xbf16>
    %cst_8 = arith.constant dense<0.000000e+00> : vector<32x128xf32>
    %10 = tpu.matmul %8, %9, %cst_8 {dimension_numbers = #tpu.dot_dimension_numbers<[1], [0], [0], [1], [0, 0, 1, 1], [], []>} : vector<32x256xbf16>, vector<256x128xbf16>, vector<32x128xf32> -> vector<32x128xf32>
    %c0_9 = arith.constant 0 : index
    %c0_10 = arith.constant 0 : index
    %11 = vector.load %arg5[%c0_9, %c0_10] : memref<1x128xf32, #tpu.memory_space<vmem>>, vector<1x128xf32>
    %12 = vector.broadcast %11 : vector<1x128xf32> to vector<32x128xf32>
    %13 = arith.addf %10, %12 : vector<32x128xf32>
    %c0_11 = arith.constant 0 : index
    %c0_12 = arith.constant 0 : index
    %14 = vector.load %arg6[%c0_11, %c0_12] : memref<32x128xf32, #tpu.memory_space<vmem>>, vector<32x128xf32>
    tpu.vector_store %arg6[%c0_11, %c0_12], %13 {strides = array<i32>} : memref<32x128xf32, #tpu.memory_space<vmem>>, vector<32x128xf32>,
    return
  }
  func.func @transform_0(%arg0: i32) -> (i32, i32) {
    %c0_i32 = arith.constant 0 : i32
    %c0_i32_0 = arith.constant 0 : i32
    return %arg0, %c0_i32 : i32, i32
  }
  func.func @transform_1(%arg0: i32) -> (i32, i32) {
    %c0_i32 = arith.constant 0 : i32
    %c0_i32_0 = arith.constant 0 : i32
    %c0_i32_1 = arith.constant 0 : i32
    return %c0_i32, %c0_i32_0 : i32, i32
  }
  func.func @transform_2(%arg0: i32) -> (i32, i32) {
    %c0_i32 = arith.constant 0 : i32
    %c0_i32_0 = arith.constant 0 : i32
    %c0_i32_1 = arith.constant 0 : i32
    return %c0_i32, %c0_i32_0 : i32, i32
  }
  func.func @transform_3(%arg0: i32) -> (i32, i32) {
    %c0_i32 = arith.constant 0 : i32
    %c0_i32_0 = arith.constant 0 : i32
    %c0_i32_1 = arith.constant 0 : i32
    return %c0_i32, %c0_i32_0 : i32, i32
  }
  func.func @transform_4(%arg0: i32) -> (i32, i32) {
    %c0_i32 = arith.constant 0 : i32
    %c0_i32_0 = arith.constant 0 : i32
    %c0_i32_1 = arith.constant 0 : i32
    return %c0_i32, %c0_i32_0 : i32, i32
  }
  func.func @transform_5(%arg0: i32) -> (i32, i32) {
    %c0_i32 = arith.constant 0 : i32
    %c0_i32_0 = arith.constant 0 : i32
    return %arg0, %c0_i32 : i32, i32
  }
}

</mosaic_0001>

<llo_original>
// kernel: dynamics_mlp_ode.1
$region0: #{dynamics_mlp_ode.1}
  #allocation0 [shape = 'u32[]', space=smem, size = 0x4, offset = 0x4, fixed_abs, tag = 'smem constant byte address 0x4 - core index']
  #allocation1 [shape = 'u32[144,128]{1,0:T(1,128)}', space=vmem, size = 0x12000, scoped, tag = 'internal scratch']
  %s0 = inlined_call_operand.vmem [shape: bf16[32,128], index: 0, kind: input, shape index: {}]
  %s1 = inlined_call_operand.vmem [shape: bf16[128,256], index: 1, kind: input, shape index: {}]
  %s2 = inlined_call_operand.vmem [shape: f32[1,256], index: 2, kind: input, shape index: {}]
  %s3 = inlined_call_operand.vmem [shape: bf16[256,128], index: 3, kind: input, shape index: {}]
  %s4 = inlined_call_operand.vmem [shape: f32[1,128], index: 4, kind: input, shape index: {}]
  %s5 = inlined_call_operand.vmem [shape: f32[32,128], index: 5, kind: output, shape index: {}]
  %s6 = sld [smem:[#allocation0]]
  $region30: #{dynamics_mlp_ode.1} parent=0
    _
  %s8 = ssub.s32 1, %s6
  %s9 = scalar_select 0, %s8, %s6
  // Predicated region
  $region2: #{dynamics_mlp_ode.1} parent=0 // pred_check
    _
  $region3: #{dynamics_mlp_ode.1} parent=0 // pred_check_branch
    %11 = sbr.rel (0) target = $region5
  $region4: #{dynamics_mlp_ode.1} parent=0 // pred_region
    _
  $region5: #{dynamics_mlp_ode.1} parent=0 // pred_fallthru
    _
  // Predicated region
  $region6: #{dynamics_mlp_ode.1} parent=0 // pred_check
    _
  $region7: #{dynamics_mlp_ode.1} parent=0 // pred_check_branch
    %13 = sbr.rel (0) target = $region9
  $region8: #{dynamics_mlp_ode.1} parent=0 // pred_region
    _
  $region9: #{dynamics_mlp_ode.1} parent=0 // pred_fallthru
    _
  // Predicated region
  $region10: #{dynamics_mlp_ode.1} parent=0 // pred_check
    _
  $region11: #{dynamics_mlp_ode.1} parent=0 // pred_check_branch
    %15 = sbr.rel (0) target = $region13
  $region12: #{dynamics_mlp_ode.1} parent=0 // pred_region
    _
  $region13: #{dynamics_mlp_ode.1} parent=0 // pred_fallthru
    _
  // Predicated region
  $region14: #{dynamics_mlp_ode.1} parent=0 // pred_check
    _
  $region15: #{dynamics_mlp_ode.1} parent=0 // pred_check_branch
    %17 = sbr.rel (0) target = $region17
  $region16: #{dynamics_mlp_ode.1} parent=0 // pred_region
    _
  $region17: #{dynamics_mlp_ode.1} parent=0 // pred_fallthru
    _
  // Predicated region
  $region18: #{dynamics_mlp_ode.1} parent=0 // pred_check
    _
  $region19: #{dynamics_mlp_ode.1} parent=0 // pred_check_branch
    %19 = sbr.rel (0) target = $region21
  $region20: #{dynamics_mlp_ode.1} parent=0 // pred_region
    _
  $region21: #{dynamics_mlp_ode.1} parent=0 // pred_fallthru
    _
  %v21 = vld [vmem:[%s0] sm:$0xf]
  %v22 = vld [vmem:[%s0 + $0x4] sm:$0xf]
  %v23 = vld [vmem:[%s0 + $0x8] sm:$0xf]
  %v24 = vld [vmem:[%s0 + $0xc] sm:$0xf]
  %v25 = vld [vmem:[%s1] sm:$0xff]
  %v26 = vld [vmem:[%s1 + $0x8] sm:$0xff]
  %v27 = vld [vmem:[%s1 + $0x10] sm:$0xff]
  %v28 = vld [vmem:[%s1 + $0x18] sm:$0xff]
  %v29 = vld [vmem:[%s1 + $0x20] sm:$0xff]
  %v30 = vld [vmem:[%s1 + $0x28] sm:$0xff]
  %v31 = vld [vmem:[%s1 + $0x30] sm:$0xff]
  %v32 = vld [vmem:[%s1 + $0x38] sm:$0xff]
  %v33 = vld [vmem:[%s1 + $0x40] sm:$0xff]
  %v34 = vld [vmem:[%s1 + $0x48] sm:$0xff]
  %v35 = vld [vmem:[%s1 + $0x50] sm:$0xff]
  %v36 = vld [vmem:[%s1 + $0x58] sm:$0xff]
  %v37 = vld [vmem:[%s1 + $0x60] sm:$0xff]
  %v38 = vld [vmem:[%s1 + $0x68] sm:$0xff]
  %v39 = vld [vmem:[%s1 + $0x70] sm:$0xff]
  %v40 = vld [vmem:[%s1 + $0x78] sm:$0xff]
  %v41 = vld [vmem:[%s2] sm:$0x3]
  %v43 = vlaneseq
  %v44 = vshrl.u32 %v43, 7
  %v45 = vsub.s32 0, %v44
  %v46 = vrot.slane %v41, %v45
  %v47 = vlaneseq
  %v48 = vshrl.u32 %v47, 7
  %v49 = vsub.s32 1, %v48
  %v50 = vrot.slane %v41, %v49
  %v57 = vunpack.c.l.b16 %v21
  %v58 = vunpack.c.l.b16 %v22
  %v59 = vunpack.c.l.b16 %v23
  %v60 = vunpack.c.l.b16 %v24
  %v61 = vpack.c.b16 %v58, %v57
  %v62 = vpack.c.b16 %v60, %v59
  %v81 = vunpack.c.l.b16 %v25
  %v82 = vunpack.c.h.b16 %v25
  %v83 = vunpack.c.l.b16 %v26
  %v84 = vunpack.c.h.b16 %v26
  %v85 = vunpack.c.l.b16 %v27
  %v86 = vunpack.c.h.b16 %v27
  %v87 = vunpack.c.l.b16 %v28
  %v88 = vunpack.c.h.b16 %v28
  %v89 = vunpack.c.l.b16 %v29
  %v90 = vunpack.c.h.b16 %v29
  %v91 = vunpack.c.l.b16 %v30
  %v92 = vunpack.c.h.b16 %v30
  %v93 = vunpack.c.l.b16 %v31
  %v94 = vunpack.c.h.b16 %v31
  %v95 = vunpack.c.l.b16 %v32
  %v96 = vunpack.c.h.b16 %v32
  %v97 = vunpack.c.l.b16 %v33
  %v98 = vunpack.c.h.b16 %v33
  %v99 = vunpack.c.l.b16 %v34
  %v100 = vunpack.c.h.b16 %v34
  %v101 = vunpack.c.l.b16 %v35
  %v102 = vunpack.c.h.b16 %v35
  %v103 = vunpack.c.l.b16 %v36
  %v104 = vunpack.c.h.b16 %v36
  %v105 = vunpack.c.l.b16 %v37
  %v106 = vunpack.c.h.b16 %v37
  %v107 = vunpack.c.l.b16 %v38
  %v108 = vunpack.c.h.b16 %v38
  %v109 = vunpack.c.l.b16 %v39
  %v110 = vunpack.c.h.b16 %v39
  %v111 = vunpack.c.l.b16 %v40
  %v112 = vunpack.c.h.b16 %v40
  %v113 = vpack.c.b16 %v83, %v81
  %v114 = vpack.c.b16 %v84, %v82
  %v115 = vpack.c.b16 %v87, %v85
  %v116 = vpack.c.b16 %v88, %v86
  %v117 = vpack.c.b16 %v91, %v89
  %v118 = vpack.c.b16 %v92, %v90
  %v119 = vpack.c.b16 %v95, %v93
  %v120 = vpack.c.b16 %v96, %v94
  %v121 = vpack.c.b16 %v99, %v97
  %v122 = vpack.c.b16 %v100, %v98
  %v123 = vpack.c.b16 %v103, %v101
  %v124 = vpack.c.b16 %v104, %v102
  %v125 = vpack.c.b16 %v107, %v105
  %v126 = vpack.c.b16 %v108, %v106
  %v127 = vpack.c.b16 %v111, %v109
  %v128 = vpack.c.b16 %v112, %v110
  %145 = vmatprep.subr.bf16.mxu0 %v114
  %146 = vmatpush1.bf16.msra.mxu0 %v113
  %147 = vmatprep.subr.bf16.mxu0 %v116
  %148 = vmatpush1.bf16.msra.mxu0 %v115
  %149 = vmatprep.subr.bf16.mxu0 %v118
  %150 = vmatpush1.bf16.msra.mxu0 %v117
  %151 = vmatprep.subr.bf16.mxu0 %v120
  %152 = vmatpush1.bf16.msra.mxu0 %v119
  %153 = vmatprep.subr.bf16.mxu0 %v122
  %154 = vmatpush1.bf16.msra.mxu0 %v121
  %155 = vmatprep.subr.bf16.mxu0 %v124
  %156 = vmatpush1.bf16.msra.mxu0 %v123
  %157 = vmatprep.subr.bf16.mxu0 %v126
  %158 = vmatpush1.bf16.msra.mxu0 %v125
  %159 = vmatprep.subr.bf16.mxu0 %v128
  %160 = vmatpush1.bf16.msra.mxu0 %v127
  %161 = vmatprep.subr.bf16.mxu0 0
  %162 = vmatpush1.bf16.msra.mxu0 0
  %163 = vmatprep.subr.bf16.mxu0 0
  %164 = vmatpush1.bf16.msra.mxu0 0
  %165 = vmatprep.subr.bf16.mxu0 0
  %166 = vmatpush1.bf16.msra.mxu0 0
  %167 = vmatprep.subr.bf16.mxu0 0
  %168 = vmatpush1.bf16.msra.mxu0 0
  %169 = vmatprep.subr.bf16.mxu0 0
  %170 = vmatpush1.bf16.msra.mxu0 0
  %171 = vmatprep.subr.bf16.mxu0 0
  %172 = vmatpush1.bf16.msra.mxu0 0
  %173 = vmatprep.subr.bf16.mxu0 0
  %174 = vmatpush1.bf16.msra.mxu0 0
  %175 = vmatprep.subr.bf16.mxu0 0
  %176 = vmatpush1.bf16.msra.mxu0 0
  %177 = vmatprep.mubr.bf16.mxu0 0
  %178 = vmatmul.mubr.bf16.gmra.mrb[0].mxu0 %v61
  %v179 = vpop.f32.mrb[0].mxu0
  %v180 = vadd.f32 %v46, %v179
  %v181 = vpop.f32.mrb[0].mxu0
  %v182 = vadd.f32 %v50, %v181
  %v183 = vpop.f32.mrb[0].mxu0
  %v184 = vadd.f32 %v46, %v183
  %v185 = vpop.f32.mrb[0].mxu0
  %v186 = vadd.f32 %v50, %v185
  %187 = vmatprep.mubr.bf16.mxu0 0
  %188 = vmatmul.mubr.bf16.gmra.mrb[0].mxu0 %v62
  %v189 = vpop.f32.mrb[0].mxu0
  %v190 = vadd.f32 %v46, %v189
  %v191 = vpop.f32.mrb[0].mxu0
  %v192 = vadd.f32 %v50, %v191
  %v193 = vpop.f32.mrb[0].mxu0
  %v194 = vadd.f32 %v46, %v193
  %v195 = vpop.f32.mrb[0].mxu0
  %v196 = vadd.f32 %v50, %v195
  %197 = vdwg.mxu0
  %v198 = vmax.f32 %v180, 0.0
  %v199 = vmax.f32 %v182, 0.0
  %v200 = vmax.f32 %v184, 0.0
  %v201 = vmax.f32 %v186, 0.0
  %v202 = vmax.f32 %v190, 0.0
  %v203 = vmax.f32 %v192, 0.0
  %v204 = vmax.f32 %v194, 0.0
  %v205 = vmax.f32 %v196, 0.0
  %v206 = vpack.c.bf16 %v200, %v198
  %v207 = vpack.c.bf16 %v201, %v199
  %v208 = vpack.c.bf16 %v204, %v202
  %v209 = vpack.c.bf16 %v205, %v203
  %v210 = vld [vmem:[%s3] sm:$0xf]
  %v211 = vld [vmem:[%s3 + $0x4] sm:$0xf]
  %v212 = vld [vmem:[%s3 + $0x8] sm:$0xf]
  %v213 = vld [vmem:[%s3 + $0xc] sm:$0xf]
  %v214 = vld [vmem:[%s3 + $0x10] sm:$0xf]
  %v215 = vld [vmem:[%s3 + $0x14] sm:$0xf]
  %v216 = vld [vmem:[%s3 + $0x18] sm:$0xf]
  %v217 = vld [vmem:[%s3 + $0x1c] sm:$0xf]
  %v218 = vld [vmem:[%s3 + $0x20] sm:$0xf]
  %v219 = vld [vmem:[%s3 + $0x24] sm:$0xf]
  %v220 = vld [vmem:[%s3 + $0x28] sm:$0xf]
  %v221 = vld [vmem:[%s3 + $0x2c] sm:$0xf]
  %v222 = vld [vmem:[%s3 + $0x30] sm:$0xf]
  %v223 = vld [vmem:[%s3 + $0x34] sm:$0xf]
  %v224 = vld [vmem:[%s3 + $0x38] sm:$0xf]
  %v225 = vld [vmem:[%s3 + $0x3c] sm:$0xf]
  %v226 = vld [vmem:[%s3 + $0x40] sm:$0xf]
  %v227 = vld [vmem:[%s3 + $0x44] sm:$0xf]
  %v228 = vld [vmem:[%s3 + $0x48] sm:$0xf]
  %v229 = vld [vmem:[%s3 + $0x4c] sm:$0xf]
  %v230 = vld [vmem:[%s3 + $0x50] sm:$0xf]
  %v231 = vld [vmem:[%s3 + $0x54] sm:$0xf]
  %v232 = vld [vmem:[%s3 + $0x58] sm:$0xf]
  %v233 = vld [vmem:[%s3 + $0x5c] sm:$0xf]
  %v234 = vld [vmem:[%s3 + $0x60] sm:$0xf]
  %v235 = vld [vmem:[%s3 + $0x64] sm:$0xf]
  %v236 = vld [vmem:[%s3 + $0x68] sm:$0xf]
  %v237 = vld [vmem:[%s3 + $0x6c] sm:$0xf]
  %v238 = vld [vmem:[%s3 + $0x70] sm:$0xf]
  %v239 = vld [vmem:[%s3 + $0x74] sm:$0xf]
  %v240 = vld [vmem:[%s3 + $0x78] sm:$0xf]
  %v241 = vld [vmem:[%s3 + $0x7c] sm:$0xf]
  %v242 = vld [vmem:[%s4] sm:$0x1]
  %v244 = vlaneseq
  %v245 = vshrl.u32 %v244, 7
  %v246 = vsub.s32 0, %v245
  %v247 = vrot.slane %v242, %v246
  %v281 = vunpack.c.l.b16 %v210
  %v282 = vunpack.c.l.b16 %v211
  %v283 = vunpack.c.l.b16 %v212
  %v284 = vunpack.c.l.b16 %v213
  %v285 = vunpack.c.l.b16 %v214
  %v286 = vunpack.c.l.b16 %v215
  %v287 = vunpack.c.l.b16 %v216
  %v288 = vunpack.c.l.b16 %v217
  %v289 = vunpack.c.l.b16 %v218
  %v290 = vunpack.c.l.b16 %v219
  %v291 = vunpack.c.l.b16 %v220
  %v292 = vunpack.c.l.b16 %v221
  %v293 = vunpack.c.l.b16 %v222
  %v294 = vunpack.c.l.b16 %v223
  %v295 = vunpack.c.l.b16 %v224
  %v296 = vunpack.c.l.b16 %v225
  %v297 = vunpack.c.l.b16 %v226
  %v298 = vunpack.c.l.b16 %v227
  %v299 = vunpack.c.l.b16 %v228
  %v300 = vunpack.c.l.b16 %v229
  %v301 = vunpack.c.l.b16 %v230
  %v302 = vunpack.c.l.b16 %v231
  %v303 = vunpack.c.l.b16 %v232
  %v304 = vunpack.c.l.b16 %v233
  %v305 = vunpack.c.l.b16 %v234
  %v306 = vunpack.c.l.b16 %v235
  %v307 = vunpack.c.l.b16 %v236
  %v308 = vunpack.c.l.b16 %v237
  %v309 = vunpack.c.l.b16 %v238
  %v310 = vunpack.c.l.b16 %v239
  %v311 = vunpack.c.l.b16 %v240
  %v312 = vunpack.c.l.b16 %v241
  %v313 = vpack.c.b16 %v282, %v281
  %v314 = vpack.c.b16 %v284, %v283
  %v315 = vpack.c.b16 %v286, %v285
  %v316 = vpack.c.b16 %v288, %v287
  %v317 = vpack.c.b16 %v290, %v289
  %v318 = vpack.c.b16 %v292, %v291
  %v319 = vpack.c.b16 %v294, %v293
  %v320 = vpack.c.b16 %v296, %v295
  %v321 = vpack.c.b16 %v298, %v297
  %v322 = vpack.c.b16 %v300, %v299
  %v323 = vpack.c.b16 %v302, %v301
  %v324 = vpack.c.b16 %v304, %v303
  %v325 = vpack.c.b16 %v306, %v305
  %v326 = vpack.c.b16 %v308, %v307
  %v327 = vpack.c.b16 %v310, %v309
  %v328 = vpack.c.b16 %v312, %v311
  %345 = vmatprep.subr.bf16.mxu0 0
  %346 = vmatpush1.bf16.msra.mxu0 %v313
  %347 = vmatprep.subr.bf16.mxu0 0
  %348 = vmatpush1.bf16.msra.mxu0 %v314
  %349 = vmatprep.subr.bf16.mxu0 0
  %350 = vmatpush1.bf16.msra.mxu0 %v315
  %351 = vmatprep.subr.bf16.mxu0 0
  %352 = vmatpush1.bf16.msra.mxu0 %v316
  %353 = vmatprep.subr.bf16.mxu0 0
  %354 = vmatpush1.bf16.msra.mxu0 %v317
  %355 = vmatprep.subr.bf16.mxu0 0
  %356 = vmatpush1.bf16.msra.mxu0 %v318
  %357 = vmatprep.subr.bf16.mxu0 0
  %358 = vmatpush1.bf16.msra.mxu0 %v319
  %359 = vmatprep.subr.bf16.mxu0 0
  %360 = vmatpush1.bf16.msra.mxu0 %v320
  %361 = vmatprep.subr.bf16.mxu0 0
  %362 = vmatpush1.bf16.msra.mxu0 %v321
  %363 = vmatprep.subr.bf16.mxu0 0
  %364 = vmatpush1.bf16.msra.mxu0 %v322
  %365 = vmatprep.subr.bf16.mxu0 0
  %366 = vmatpush1.bf16.msra.mxu0 %v323
  %367 = vmatprep.subr.bf16.mxu0 0
  %368 = vmatpush1.bf16.msra.mxu0 %v324
  %369 = vmatprep.subr.bf16.mxu0 0
  %370 = vmatpush1.bf16.msra.mxu0 %v325
  %371 = vmatprep.subr.bf16.mxu0 0
  %372 = vmatpush1.bf16.msra.mxu0 %v326
  %373 = vmatprep.subr.bf16.mxu0 0
  %374 = vmatpush1.bf16.msra.mxu0 %v327
  %375 = vmatprep.subr.bf16.mxu0 0
  %376 = vmatpush1.bf16.msra.mxu0 %v328
  %377 = vmatprep.mubr.bf16.mxu0 %v207
  %378 = vmatmul.mubr.bf16.gmra.mrb[0].mxu0 %v206
  %v379 = vpop.f32.mrb[0].mxu0
  %v380 = vadd.f32 %v247, %v379
  %v381 = vpop.f32.mrb[0].mxu0
  %v382 = vpop.f32.mrb[0].mxu0
  %v383 = vadd.f32 %v247, %v382
  %v384 = vpop.f32.mrb[0].mxu0
  %385 = vmatprep.mubr.bf16.mxu0 %v209
  %386 = vmatmul.mubr.bf16.gmra.mrb[0].mxu0 %v208
  %v387 = vpop.f32.mrb[0].mxu0
  %v388 = vadd.f32 %v247, %v387
  %v389 = vpop.f32.mrb[0].mxu0
  %v390 = vpop.f32.mrb[0].mxu0
  %v391 = vadd.f32 %v247, %v390
  %v392 = vpop.f32.mrb[0].mxu0
  %393 = vdwg.mxu0
  %394 = vst [vmem:[%s5] sm:$0xff] %v380
  %395 = vst [vmem:[%s5 + $0x8] sm:$0xff] %v383
  %396 = vst [vmem:[%s5 + $0x10] sm:$0xff] %v388
  %397 = vst [vmem:[%s5 + $0x18] sm:$0xff] %v391
  // Predicated region
  $region22: #{dynamics_mlp_ode.1} parent=0 // pred_check
    _
  $region23: #{dynamics_mlp_ode.1} parent=0 // pred_check_branch
    %399 = sbr.rel (0) target = $region25
  $region24: #{dynamics_mlp_ode.1} parent=0 // pred_region
    _
  $region25: #{dynamics_mlp_ode.1} parent=0 // pred_fallthru
    _
  // Predicated region
  $region26: #{dynamics_mlp_ode.1} parent=0 // pred_check
    _
  $region27: #{dynamics_mlp_ode.1} parent=0 // pred_check_branch
    %401 = sbr.rel (0) target = $region29
  $region28: #{dynamics_mlp_ode.1} parent=0 // pred_region
    _
  $region29: #{dynamics_mlp_ode.1} parent=0 // pred_fallthru
    _

</llo_original>
